<compile_context>
chip_gen: v5e
topology: v5e:2x2
jax: 0.10.0
libtpu: 0.0.40
codegen_flags: <defaults>
</compile_context>

<pallas_src>
import functools
import math

import jax
import jax.numpy as jnp
from jax.experimental import pallas as pl
from jax.experimental.pallas import tpu as pltpu

_NUM_LAYERS = 6
_PAD_OUT = 128  # lane-dense padding for every layer's output feature dim


def _round_up(x, m):
    return ((x + m - 1) // m) * m


# ----------------------------------------------------------------------------
# Fused kernel: one invocation == both full 6-layer MLPs (mu then scale)
# ----------------------------------------------------------------------------
def _fused_mlp_kernel(w_ref, b_ref, mu_ref, scale_ref, *, rows, k_pad):
    """w_ref:    (2, 6, k_pad, 128) zero-padded (in, out) weights (net 0 = mu,
                 net 1 = scale).
       b_ref:    (2, 6, 1, 128)     zero-padded biases.
       mu_ref:   (rows, 128)        padded mu output.
       scale_ref:(rows, 128)        padded softplus(scale) output.
       Rows >= base_skills_num contain ReLU(bias) garbage propagated through
       the layers; the wrapper slices them (and the padded lanes) off."""
    for net in range(2):  # static unroll: 0 = mu, 1 = scale
        # Layer 0: module input is the identity matrix, so eye @ W0 + b0 == W0 + b0.
        h = w_ref[net, 0][:rows, :] + b_ref[net, 0]
        h = jnp.maximum(h, 0.0)

        # Layers 1..4: Linear + ReLU.  Only the first k_pad columns of h are
        # real (rest are exact zeros from the padding), so feed h[:, :k_pad]
        # to match the compact-K weight slab.
        for i in range(1, _NUM_LAYERS - 1):
            h = jnp.dot(h[:, :k_pad], w_ref[net, i],
                        preferred_element_type=jnp.float32) + b_ref[net, i]
            h = jnp.maximum(h, 0.0)

        # Final Linear.
        out = jnp.dot(h[:, :k_pad], w_ref[net, _NUM_LAYERS - 1],
                      preferred_element_type=jnp.float32) + b_ref[net, _NUM_LAYERS - 1]

        if net == 0:
            mu_ref[...] = out
        else:
            # Softplus (beta=1, threshold=20), applied statically to net 1 only.
            scale_ref[...] = jnp.where(
                out > 20.0, out, jnp.log1p(jnp.exp(jnp.minimum(out, 20.0))))


# ----------------------------------------------------------------------------
# Parameter construction (deterministic, PyTorch-style nn.Linear init)
# ----------------------------------------------------------------------------
def _linear_init(key, fan_in, fan_out):
    kw, kb = jax.random.split(key)
    bound = 1.0 / math.sqrt(fan_in)
    w = jax.random.uniform(kw, (fan_in, fan_out), jnp.float32, -bound, bound)
    b = jax.random.uniform(kb, (fan_out,), jnp.float32, -bound, bound)
    return w, b


def make_prior_locator_params(key, base_skills_num, p_hidden_dim, latent_dim):
    dims = [(base_skills_num, p_hidden_dim)] + \
           [(p_hidden_dim, p_hidden_dim)] * 4 + \
           [(p_hidden_dim, latent_dim)]
    keys = jax.random.split(key, 2 * len(dims))
    mu_params = [_linear_init(keys[i], fi, fo) for i, (fi, fo) in enumerate(dims)]
    scale_params = [_linear_init(keys[len(dims) + i], fi, fo)
                    for i, (fi, fo) in enumerate(dims)]
    return {"mu": mu_params, "scale": scale_params}


def pack_prior_locator_params(params, base_skills_num, p_hidden_dim, latent_dim):
    """Pack per-layer (W, b) lists into compact-K, lane-dense zero-padded slabs.

    Returns (w_slab: f32[2, 6, k_pad, 128], b_slab: f32[2, 6, 1, 128]).
    Done once, host-side."""
    assert base_skills_num <= 128, "base_skills_num must be <= 128 for this packing"
    assert p_hidden_dim <= 128, "p_hidden_dim must be <= 128 for this packing"
    assert latent_dim <= 128, "latent_dim must be <= 128 for this packing"
    k_pad = _round_up(max(base_skills_num, p_hidden_dim), 8)

    def pack_net(layers):
        ws, bs = [], []
        for w, b in layers:
            assert w.shape[0] <= k_pad and w.shape[1] <= _PAD_OUT
            wp = jnp.zeros((k_pad, _PAD_OUT), jnp.float32)
            wp = wp.at[:w.shape[0], :w.shape[1]].set(w.astype(jnp.float32))
            bp = jnp.zeros((1, _PAD_OUT), jnp.float32)
            bp = bp.at[0, :b.shape[0]].set(b.astype(jnp.float32))
            ws.append(wp)
            bs.append(bp)
        return jnp.stack(ws), jnp.stack(bs)          # (6,k_pad,128), (6,1,128)

    w_mu, b_mu = pack_net(params["mu"])
    w_sc, b_sc = pack_net(params["scale"])
    return jnp.stack([w_mu, w_sc]), jnp.stack([b_mu, b_sc])


# ----------------------------------------------------------------------------
# Forward (mirrors PriorLocator.forward)
# ----------------------------------------------------------------------------
def prior_locator_forward(packed, base_skills_num, latent_dim, repeat):
    w_slab, b_slab = packed
    k_pad = w_slab.shape[2]
    rows = _round_up(base_skills_num, 8)             # sublane-align output rows
    assert rows <= k_pad

    kernel = functools.partial(_fused_mlp_kernel, rows=rows, k_pad=k_pad)
    flops = 2 * (_NUM_LAYERS - 1) * 2 * rows * k_pad * _PAD_OUT  # 2 nets x 5 matmuls
    bytes_accessed = 4 * int(w_slab.size + b_slab.size + 2 * rows * _PAD_OUT)

    vmem = pl.BlockSpec(memory_space=pltpu.MemorySpace.VMEM)
    mu, scale = pl.pallas_call(
        kernel,
        out_shape=(jax.ShapeDtypeStruct((rows, _PAD_OUT), jnp.float32),
                   jax.ShapeDtypeStruct((rows, _PAD_OUT), jnp.float32)),
        in_specs=[vmem, vmem],
        out_specs=(vmem, vmem),
        cost_estimate=pl.CostEstimate(
            flops=flops,
            transcendentals=2 * rows * _PAD_OUT,
            bytes_accessed=bytes_accessed),
    )(w_slab, b_slab)

    p_mu = mu[:base_skills_num, :latent_dim]
    p_scale = scale[:base_skills_num, :latent_dim]
    # torch.tile(p[None], (repeat, 1, 1)) -> broadcast, no HBM materialization
    p_mu = jnp.broadcast_to(p_mu[None], (repeat, base_skills_num, latent_dim))
    p_scale = jnp.broadcast_to(p_scale[None], (repeat, base_skills_num, latent_dim))
    return {"p_mu": p_mu, "p_scale": p_scale}


# ----------------------------------------------------------------------------
# Pure-JAX reference for a quick sanity check
# ----------------------------------------------------------------------------
def _ref_forward(params, base_skills_num, repeat):
    x = jnp.eye(base_skills_num, dtype=jnp.float32)

    def mlp(x, ps, softplus):
        h = x
        for w, b in ps[:-1]:
            h = jnp.maximum(h @ w + b, 0.0)
        w, b = ps[-1]
        out = h @ w + b
        if softplus:
            out = jnp.where(out > 20.0, out,
                            jnp.log1p(jnp.exp(jnp.minimum(out, 20.0))))
        return out

    p_mu = jnp.tile(mlp(x, params["mu"], False)[None], (repeat, 1, 1))
    p_scale = jnp.tile(mlp(x, params["scale"], True)[None], (repeat, 1, 1))
    return {"p_mu": p_mu, "p_scale": p_scale}


if __name__ == "__main__":
    base_skills_num = 8
    p_hidden_dim = 32
    latent_dim = 16
    repeat = 2

    key = jax.random.PRNGKey(0)
    params = make_prior_locator_params(key, base_skills_num, p_hidden_dim,
                                       latent_dim)
    packed = pack_prior_locator_params(params, base_skills_num, p_hidden_dim,
                                       latent_dim)          # one-time packing

    out = prior_locator_forward(packed, base_skills_num, latent_dim, repeat)
    jax.block_until_ready(out)

    ref = _ref_forward(params, base_skills_num, repeat)
    assert out["p_mu"].shape == (repeat, base_skills_num, latent_dim)
    assert out["p_scale"].shape == (repeat, base_skills_num, latent_dim)
    assert jnp.allclose(out["p_mu"], ref["p_mu"], atol=1e-5, rtol=1e-5)
    assert jnp.allclose(out["p_scale"], ref["p_scale"], atol=1e-5, rtol=1e-5)
    assert bool(jnp.all(out["p_scale"] > 0.0))  # softplus output is positive

    print("KERNEL_OK")
</pallas_src>

<mosaic_0001>
module attributes {stable_mosaic.version = 11 : i64} {
  func.func @_fused_mlp_kernel(%arg0: memref<2x6x32x128xf32, #tpu.memory_space<vmem>>, %arg1: memref<2x6x1x128xf32, #tpu.memory_space<vmem>>, %arg2: memref<8x128xf32, #tpu.memory_space<vmem>>, %arg3: memref<8x128xf32, #tpu.memory_space<vmem>>) attributes {dimension_semantics = [], scalar_prefetch = 0 : i64, scratch_operands = 0 : i64, tpu.core_type = #tpu.core_type<tc>} {
    %c0 = arith.constant 0 : index
    %c0_0 = arith.constant 0 : index
    %c0_1 = arith.constant 0 : index
    %c0_2 = arith.constant 0 : index
    %0 = vector.load %arg0[%c0, %c0_0, %c0_1, %c0_2] : memref<2x6x32x128xf32, #tpu.memory_space<vmem>>, vector<1x1x32x128xf32>
    %1 = vector.shape_cast %0 : vector<1x1x32x128xf32> to vector<32x128xf32>
    %2 = vector.extract_strided_slice %1 {offsets = [0, 0], sizes = [8, 128], strides = [1, 1]} : vector<32x128xf32> to vector<8x128xf32>
    %c0_3 = arith.constant 0 : index
    %c0_4 = arith.constant 0 : index
    %c0_5 = arith.constant 0 : index
    %c0_6 = arith.constant 0 : index
    %3 = vector.load %arg1[%c0_3, %c0_4, %c0_5, %c0_6] : memref<2x6x1x128xf32, #tpu.memory_space<vmem>>, vector<1x1x1x128xf32>
    %4 = vector.shape_cast %3 : vector<1x1x1x128xf32> to vector<1x128xf32>
    %5 = vector.broadcast %4 : vector<1x128xf32> to vector<8x128xf32>
    %6 = arith.addf %2, %5 : vector<8x128xf32>
    %cst = arith.constant 0.000000e+00 : f32
    %7 = vector.broadcast %cst : f32 to vector<8x128xf32>
    %8 = arith.maximumf %6, %7 : vector<8x128xf32>
    %9 = vector.extract_strided_slice %8 {offsets = [0, 0], sizes = [8, 32], strides = [1, 1]} : vector<8x128xf32> to vector<8x32xf32>
    %c0_7 = arith.constant 0 : index
    %c1 = arith.constant 1 : index
    %c0_8 = arith.constant 0 : index
    %c0_9 = arith.constant 0 : index
    %10 = vector.load %arg0[%c0_7, %c1, %c0_8, %c0_9] : memref<2x6x32x128xf32, #tpu.memory_space<vmem>>, vector<1x1x32x128xf32>
    %11 = vector.shape_cast %10 : vector<1x1x32x128xf32> to vector<32x128xf32>
    %cst_10 = arith.constant dense<0.000000e+00> : vector<8x128xf32>
    %12 = tpu.matmul %9, %11, %cst_10 {dimension_numbers = #tpu.dot_dimension_numbers<[1], [0], [0], [1], [0, 0, 1, 1], [], []>} : vector<8x32xf32>, vector<32x128xf32>, vector<8x128xf32> -> vector<8x128xf32>
    %c0_11 = arith.constant 0 : index
    %c1_12 = arith.constant 1 : index
    %c0_13 = arith.constant 0 : index
    %c0_14 = arith.constant 0 : index
    %13 = vector.load %arg1[%c0_11, %c1_12, %c0_13, %c0_14] : memref<2x6x1x128xf32, #tpu.memory_space<vmem>>, vector<1x1x1x128xf32>
    %14 = vector.shape_cast %13 : vector<1x1x1x128xf32> to vector<1x128xf32>
    %15 = vector.broadcast %14 : vector<1x128xf32> to vector<8x128xf32>
    %16 = arith.addf %12, %15 : vector<8x128xf32>
    %cst_15 = arith.constant 0.000000e+00 : f32
    %17 = vector.broadcast %cst_15 : f32 to vector<8x128xf32>
    %18 = arith.maximumf %16, %17 : vector<8x128xf32>
    %19 = vector.extract_strided_slice %18 {offsets = [0, 0], sizes = [8, 32], strides = [1, 1]} : vector<8x128xf32> to vector<8x32xf32>
    %c0_16 = arith.constant 0 : index
    %c2 = arith.constant 2 : index
    %c0_17 = arith.constant 0 : index
    %c0_18 = arith.constant 0 : index
    %20 = vector.load %arg0[%c0_16, %c2, %c0_17, %c0_18] : memref<2x6x32x128xf32, #tpu.memory_space<vmem>>, vector<1x1x32x128xf32>
    %21 = vector.shape_cast %20 : vector<1x1x32x128xf32> to vector<32x128xf32>
    %cst_19 = arith.constant dense<0.000000e+00> : vector<8x128xf32>
    %22 = tpu.matmul %19, %21, %cst_19 {dimension_numbers = #tpu.dot_dimension_numbers<[1], [0], [0], [1], [0, 0, 1, 1], [], []>} : vector<8x32xf32>, vector<32x128xf32>, vector<8x128xf32> -> vector<8x128xf32>
    %c0_20 = arith.constant 0 : index
    %c2_21 = arith.constant 2 : index
    %c0_22 = arith.constant 0 : index
    %c0_23 = arith.constant 0 : index
    %23 = vector.load %arg1[%c0_20, %c2_21, %c0_22, %c0_23] : memref<2x6x1x128xf32, #tpu.memory_space<vmem>>, vector<1x1x1x128xf32>
    %24 = vector.shape_cast %23 : vector<1x1x1x128xf32> to vector<1x128xf32>
    %25 = vector.broadcast %24 : vector<1x128xf32> to vector<8x128xf32>
    %26 = arith.addf %22, %25 : vector<8x128xf32>
    %cst_24 = arith.constant 0.000000e+00 : f32
    %27 = vector.broadcast %cst_24 : f32 to vector<8x128xf32>
    %28 = arith.maximumf %26, %27 : vector<8x128xf32>
    %29 = vector.extract_strided_slice %28 {offsets = [0, 0], sizes = [8, 32], strides = [1, 1]} : vector<8x128xf32> to vector<8x32xf32>
    %c0_25 = arith.constant 0 : index
    %c3 = arith.constant 3 : index
    %c0_26 = arith.constant 0 : index
    %c0_27 = arith.constant 0 : index
    %30 = vector.load %arg0[%c0_25, %c3, %c0_26, %c0_27] : memref<2x6x32x128xf32, #tpu.memory_space<vmem>>, vector<1x1x32x128xf32>
    %31 = vector.shape_cast %30 : vector<1x1x32x128xf32> to vector<32x128xf32>
    %cst_28 = arith.constant dense<0.000000e+00> : vector<8x128xf32>
    %32 = tpu.matmul %29, %31, %cst_28 {dimension_numbers = #tpu.dot_dimension_numbers<[1], [0], [0], [1], [0, 0, 1, 1], [], []>} : vector<8x32xf32>, vector<32x128xf32>, vector<8x128xf32> -> vector<8x128xf32>
    %c0_29 = arith.constant 0 : index
    %c3_30 = arith.constant 3 : index
    %c0_31 = arith.constant 0 : index
    %c0_32 = arith.constant 0 : index
    %33 = vector.load %arg1[%c0_29, %c3_30, %c0_31, %c0_32] : memref<2x6x1x128xf32, #tpu.memory_space<vmem>>, vector<1x1x1x128xf32>
    %34 = vector.shape_cast %33 : vector<1x1x1x128xf32> to vector<1x128xf32>
    %35 = vector.broadcast %34 : vector<1x128xf32> to vector<8x128xf32>
    %36 = arith.addf %32, %35 : vector<8x128xf32>
    %cst_33 = arith.constant 0.000000e+00 : f32
    %37 = vector.broadcast %cst_33 : f32 to vector<8x128xf32>
    %38 = arith.maximumf %36, %37 : vector<8x128xf32>
    %39 = vector.extract_strided_slice %38 {offsets = [0, 0], sizes = [8, 32], strides = [1, 1]} : vector<8x128xf32> to vector<8x32xf32>
    %c0_34 = arith.constant 0 : index
    %c4 = arith.constant 4 : index
    %c0_35 = arith.constant 0 : index
    %c0_36 = arith.constant 0 : index
    %40 = vector.load %arg0[%c0_34, %c4, %c0_35, %c0_36] : memref<2x6x32x128xf32, #tpu.memory_space<vmem>>, vector<1x1x32x128xf32>
    %41 = vector.shape_cast %40 : vector<1x1x32x128xf32> to vector<32x128xf32>
    %cst_37 = arith.constant dense<0.000000e+00> : vector<8x128xf32>
    %42 = tpu.matmul %39, %41, %cst_37 {dimension_numbers = #tpu.dot_dimension_numbers<[1], [0], [0], [1], [0, 0, 1, 1], [], []>} : vector<8x32xf32>, vector<32x128xf32>, vector<8x128xf32> -> vector<8x128xf32>
    %c0_38 = arith.constant 0 : index
    %c4_39 = arith.constant 4 : index
    %c0_40 = arith.constant 0 : index
    %c0_41 = arith.constant 0 : index
    %43 = vector.load %arg1[%c0_38, %c4_39, %c0_40, %c0_41] : memref<2x6x1x128xf32, #tpu.memory_space<vmem>>, vector<1x1x1x128xf32>
    %44 = vector.shape_cast %43 : vector<1x1x1x128xf32> to vector<1x128xf32>
    %45 = vector.broadcast %44 : vector<1x128xf32> to vector<8x128xf32>
    %46 = arith.addf %42, %45 : vector<8x128xf32>
    %cst_42 = arith.constant 0.000000e+00 : f32
    %47 = vector.broadcast %cst_42 : f32 to vector<8x128xf32>
    %48 = arith.maximumf %46, %47 : vector<8x128xf32>
    %49 = vector.extract_strided_slice %48 {offsets = [0, 0], sizes = [8, 32], strides = [1, 1]} : vector<8x128xf32> to vector<8x32xf32>
    %c0_43 = arith.constant 0 : index
    %c5 = arith.constant 5 : index
    %c0_44 = arith.constant 0 : index
    %c0_45 = arith.constant 0 : index
    %50 = vector.load %arg0[%c0_43, %c5, %c0_44, %c0_45] : memref<2x6x32x128xf32, #tpu.memory_space<vmem>>, vector<1x1x32x128xf32>
    %51 = vector.shape_cast %50 : vector<1x1x32x128xf32> to vector<32x128xf32>
    %cst_46 = arith.constant dense<0.000000e+00> : vector<8x128xf32>
    %52 = tpu.matmul %49, %51, %cst_46 {dimension_numbers = #tpu.dot_dimension_numbers<[1], [0], [0], [1], [0, 0, 1, 1], [], []>} : vector<8x32xf32>, vector<32x128xf32>, vector<8x128xf32> -> vector<8x128xf32>
    %c0_47 = arith.constant 0 : index
    %c5_48 = arith.constant 5 : index
    %c0_49 = arith.constant 0 : index
    %c0_50 = arith.constant 0 : index
    %53 = vector.load %arg1[%c0_47, %c5_48, %c0_49, %c0_50] : memref<2x6x1x128xf32, #tpu.memory_space<vmem>>, vector<1x1x1x128xf32>
    %54 = vector.shape_cast %53 : vector<1x1x1x128xf32> to vector<1x128xf32>
    %55 = vector.broadcast %54 : vector<1x128xf32> to vector<8x128xf32>
    %56 = arith.addf %52, %55 : vector<8x128xf32>
    %c0_51 = arith.constant 0 : index
    %c0_52 = arith.constant 0 : index
    %57 = vector.load %arg2[%c0_51, %c0_52] : memref<8x128xf32, #tpu.memory_space<vmem>>, vector<8x128xf32>
    tpu.vector_store %arg2[%c0_51, %c0_52], %56 {strides = array<i32>} : memref<8x128xf32, #tpu.memory_space<vmem>>, vector<8x128xf32>,
    %c1_53 = arith.constant 1 : index
    %c0_54 = arith.constant 0 : index
    %c0_55 = arith.constant 0 : index
    %c0_56 = arith.constant 0 : index
    %58 = vector.load %arg0[%c1_53, %c0_54, %c0_55, %c0_56] : memref<2x6x32x128xf32, #tpu.memory_space<vmem>>, vector<1x1x32x128xf32>
    %59 = vector.shape_cast %58 : vector<1x1x32x128xf32> to vector<32x128xf32>
    %60 = vector.extract_strided_slice %59 {offsets = [0, 0], sizes = [8, 128], strides = [1, 1]} : vector<32x128xf32> to vector<8x128xf32>
    %c1_57 = arith.constant 1 : index
    %c0_58 = arith.constant 0 : index
    %c0_59 = arith.constant 0 : index
    %c0_60 = arith.constant 0 : index
    %61 = vector.load %arg1[%c1_57, %c0_58, %c0_59, %c0_60] : memref<2x6x1x128xf32, #tpu.memory_space<vmem>>, vector<1x1x1x128xf32>
    %62 = vector.shape_cast %61 : vector<1x1x1x128xf32> to vector<1x128xf32>
    %63 = vector.broadcast %62 : vector<1x128xf32> to vector<8x128xf32>
    %64 = arith.addf %60, %63 : vector<8x128xf32>
    %cst_61 = arith.constant 0.000000e+00 : f32
    %65 = vector.broadcast %cst_61 : f32 to vector<8x128xf32>
    %66 = arith.maximumf %64, %65 : vector<8x128xf32>
    %67 = vector.extract_strided_slice %66 {offsets = [0, 0], sizes = [8, 32], strides = [1, 1]} : vector<8x128xf32> to vector<8x32xf32>
    %c1_62 = arith.constant 1 : index
    %c1_63 = arith.constant 1 : index
    %c0_64 = arith.constant 0 : index
    %c0_65 = arith.constant 0 : index
    %68 = vector.load %arg0[%c1_62, %c1_63, %c0_64, %c0_65] : memref<2x6x32x128xf32, #tpu.memory_space<vmem>>, vector<1x1x32x128xf32>
    %69 = vector.shape_cast %68 : vector<1x1x32x128xf32> to vector<32x128xf32>
    %cst_66 = arith.constant dense<0.000000e+00> : vector<8x128xf32>
    %70 = tpu.matmul %67, %69, %cst_66 {dimension_numbers = #tpu.dot_dimension_numbers<[1], [0], [0], [1], [0, 0, 1, 1], [], []>} : vector<8x32xf32>, vector<32x128xf32>, vector<8x128xf32> -> vector<8x128xf32>
    %c1_67 = arith.constant 1 : index
    %c1_68 = arith.constant 1 : index
    %c0_69 = arith.constant 0 : index
    %c0_70 = arith.constant 0 : index
    %71 = vector.load %arg1[%c1_67, %c1_68, %c0_69, %c0_70] : memref<2x6x1x128xf32, #tpu.memory_space<vmem>>, vector<1x1x1x128xf32>
    %72 = vector.shape_cast %71 : vector<1x1x1x128xf32> to vector<1x128xf32>
    %73 = vector.broadcast %72 : vector<1x128xf32> to vector<8x128xf32>
    %74 = arith.addf %70, %73 : vector<8x128xf32>
    %cst_71 = arith.constant 0.000000e+00 : f32
    %75 = vector.broadcast %cst_71 : f32 to vector<8x128xf32>
    %76 = arith.maximumf %74, %75 : vector<8x128xf32>
    %77 = vector.extract_strided_slice %76 {offsets = [0, 0], sizes = [8, 32], strides = [1, 1]} : vector<8x128xf32> to vector<8x32xf32>
    %c1_72 = arith.constant 1 : index
    %c2_73 = arith.constant 2 : index
    %c0_74 = arith.constant 0 : index
    %c0_75 = arith.constant 0 : index
    %78 = vector.load %arg0[%c1_72, %c2_73, %c0_74, %c0_75] : memref<2x6x32x128xf32, #tpu.memory_space<vmem>>, vector<1x1x32x128xf32>
    %79 = vector.shape_cast %78 : vector<1x1x32x128xf32> to vector<32x128xf32>
    %cst_76 = arith.constant dense<0.000000e+00> : vector<8x128xf32>
    %80 = tpu.matmul %77, %79, %cst_76 {dimension_numbers = #tpu.dot_dimension_numbers<[1], [0], [0], [1], [0, 0, 1, 1], [], []>} : vector<8x32xf32>, vector<32x128xf32>, vector<8x128xf32> -> vector<8x128xf32>
    %c1_77 = arith.constant 1 : index
    %c2_78 = arith.constant 2 : index
    %c0_79 = arith.constant 0 : index
    %c0_80 = arith.constant 0 : index
    %81 = vector.load %arg1[%c1_77, %c2_78, %c0_79, %c0_80] : memref<2x6x1x128xf32, #tpu.memory_space<vmem>>, vector<1x1x1x128xf32>
    %82 = vector.shape_cast %81 : vector<1x1x1x128xf32> to vector<1x128xf32>
    %83 = vector.broadcast %82 : vector<1x128xf32> to vector<8x128xf32>
    %84 = arith.addf %80, %83 : vector<8x128xf32>
    %cst_81 = arith.constant 0.000000e+00 : f32
    %85 = vector.broadcast %cst_81 : f32 to vector<8x128xf32>
    %86 = arith.maximumf %84, %85 : vector<8x128xf32>
    %87 = vector.extract_strided_slice %86 {offsets = [0, 0], sizes = [8, 32], strides = [1, 1]} : vector<8x128xf32> to vector<8x32xf32>
    %c1_82 = arith.constant 1 : index
    %c3_83 = arith.constant 3 : index
    %c0_84 = arith.constant 0 : index
    %c0_85 = arith.constant 0 : index
    %88 = vector.load %arg0[%c1_82, %c3_83, %c0_84, %c0_85] : memref<2x6x32x128xf32, #tpu.memory_space<vmem>>, vector<1x1x32x128xf32>
    %89 = vector.shape_cast %88 : vector<1x1x32x128xf32> to vector<32x128xf32>
    %cst_86 = arith.constant dense<0.000000e+00> : vector<8x128xf32>
    %90 = tpu.matmul %87, %89, %cst_86 {dimension_numbers = #tpu.dot_dimension_numbers<[1], [0], [0], [1], [0, 0, 1, 1], [], []>} : vector<8x32xf32>, vector<32x128xf32>, vector<8x128xf32> -> vector<8x128xf32>
    %c1_87 = arith.constant 1 : index
    %c3_88 = arith.constant 3 : index
    %c0_89 = arith.constant 0 : index
    %c0_90 = arith.constant 0 : index
    %91 = vector.load %arg1[%c1_87, %c3_88, %c0_89, %c0_90] : memref<2x6x1x128xf32, #tpu.memory_space<vmem>>, vector<1x1x1x128xf32>
    %92 = vector.shape_cast %91 : vector<1x1x1x128xf32> to vector<1x128xf32>
    %93 = vector.broadcast %92 : vector<1x128xf32> to vector<8x128xf32>
    %94 = arith.addf %90, %93 : vector<8x128xf32>
    %cst_91 = arith.constant 0.000000e+00 : f32
    %95 = vector.broadcast %cst_91 : f32 to vector<8x128xf32>
    %96 = arith.maximumf %94, %95 : vector<8x128xf32>
    %97 = vector.extract_strided_slice %96 {offsets = [0, 0], sizes = [8, 32], strides = [1, 1]} : vector<8x128xf32> to vector<8x32xf32>
    %c1_92 = arith.constant 1 : index
    %c4_93 = arith.constant 4 : index
    %c0_94 = arith.constant 0 : index
    %c0_95 = arith.constant 0 : index
    %98 = vector.load %arg0[%c1_92, %c4_93, %c0_94, %c0_95] : memref<2x6x32x128xf32, #tpu.memory_space<vmem>>, vector<1x1x32x128xf32>
    %99 = vector.shape_cast %98 : vector<1x1x32x128xf32> to vector<32x128xf32>
    %cst_96 = arith.constant dense<0.000000e+00> : vector<8x128xf32>
    %100 = tpu.matmul %97, %99, %cst_96 {dimension_numbers = #tpu.dot_dimension_numbers<[1], [0], [0], [1], [0, 0, 1, 1], [], []>} : vector<8x32xf32>, vector<32x128xf32>, vector<8x128xf32> -> vector<8x128xf32>
    %c1_97 = arith.constant 1 : index
    %c4_98 = arith.constant 4 : index
    %c0_99 = arith.constant 0 : index
    %c0_100 = arith.constant 0 : index
    %101 = vector.load %arg1[%c1_97, %c4_98, %c0_99, %c0_100] : memref<2x6x1x128xf32, #tpu.memory_space<vmem>>, vector<1x1x1x128xf32>
    %102 = vector.shape_cast %101 : vector<1x1x1x128xf32> to vector<1x128xf32>
    %103 = vector.broadcast %102 : vector<1x128xf32> to vector<8x128xf32>
    %104 = arith.addf %100, %103 : vector<8x128xf32>
    %cst_101 = arith.constant 0.000000e+00 : f32
    %105 = vector.broadcast %cst_101 : f32 to vector<8x128xf32>
    %106 = arith.maximumf %104, %105 : vector<8x128xf32>
    %107 = vector.extract_strided_slice %106 {offsets = [0, 0], sizes = [8, 32], strides = [1, 1]} : vector<8x128xf32> to vector<8x32xf32>
    %c1_102 = arith.constant 1 : index
    %c5_103 = arith.constant 5 : index
    %c0_104 = arith.constant 0 : index
    %c0_105 = arith.constant 0 : index
    %108 = vector.load %arg0[%c1_102, %c5_103, %c0_104, %c0_105] : memref<2x6x32x128xf32, #tpu.memory_space<vmem>>, vector<1x1x32x128xf32>
    %109 = vector.shape_cast %108 : vector<1x1x32x128xf32> to vector<32x128xf32>
    %cst_106 = arith.constant dense<0.000000e+00> : vector<8x128xf32>
    %110 = tpu.matmul %107, %109, %cst_106 {dimension_numbers = #tpu.dot_dimension_numbers<[1], [0], [0], [1], [0, 0, 1, 1], [], []>} : vector<8x32xf32>, vector<32x128xf32>, vector<8x128xf32> -> vector<8x128xf32>
    %c1_107 = arith.constant 1 : index
    %c5_108 = arith.constant 5 : index
    %c0_109 = arith.constant 0 : index
    %c0_110 = arith.constant 0 : index
    %111 = vector.load %arg1[%c1_107, %c5_108, %c0_109, %c0_110] : memref<2x6x1x128xf32, #tpu.memory_space<vmem>>, vector<1x1x1x128xf32>
    %112 = vector.shape_cast %111 : vector<1x1x1x128xf32> to vector<1x128xf32>
    %113 = vector.broadcast %112 : vector<1x128xf32> to vector<8x128xf32>
    %114 = arith.addf %110, %113 : vector<8x128xf32>
    %cst_111 = arith.constant 2.000000e+01 : f32
    %115 = vector.broadcast %cst_111 : f32 to vector<8x128xf32>
    %116 = arith.cmpf ogt, %114, %115 : vector<8x128xf32>
    %cst_112 = arith.constant 2.000000e+01 : f32
    %117 = vector.broadcast %cst_112 : f32 to vector<8x128xf32>
    %118 = arith.minimumf %114, %117 : vector<8x128xf32>
    %119 = math.exp %118 : vector<8x128xf32>
    %120 = math.log1p %119 : vector<8x128xf32>
    %121 = arith.select %116, %114, %120 : vector<8x128xi1>, vector<8x128xf32>
    %c0_113 = arith.constant 0 : index
    %c0_114 = arith.constant 0 : index
    %122 = vector.load %arg3[%c0_113, %c0_114] : memref<8x128xf32, #tpu.memory_space<vmem>>, vector<8x128xf32>
    tpu.vector_store %arg3[%c0_113, %c0_114], %121 {strides = array<i32>} : memref<8x128xf32, #tpu.memory_space<vmem>>, vector<8x128xf32>,
    return
  }
}

</mosaic_0001>

<llo_original>
// kernel: tpu_custom_call.1
$region0: #{tpu_custom_call.1}
  #allocation0 [shape = 'u32[]', space=smem, size = 0x4, offset = 0x4, fixed_abs, tag = 'smem constant byte address 0x4 - core index']
  #allocation1 [shape = 'u32[72,128]{1,0:T(1,128)}', space=vmem, size = 0x9000, scoped, tag = 'internal scratch']
  %s0 = inlined_call_operand.hbm [shape: f32[2,6,32,128], index: 0, kind: input, shape index: {}]
  %s1 = inlined_call_operand.hbm [shape: f32[2,6,1,128], index: 1, kind: input, shape index: {}]
  %s2 = inlined_call_operand.hbm [shape: f32[8,128], index: 2, kind: output, shape index: {0}]
  %s3 = inlined_call_operand.hbm [shape: f32[8,128], index: 3, kind: output, shape index: {1}]
  %4 = xla_tuple %s2, %s3
  %s5 = sld [smem:[#allocation0]]
  $region34: #{tpu_custom_call.1} parent=0
    _
  %s7 = ssub.s32 1, %s5
  %s8 = scalar_select 0, %s7, %s5
  $region1: #{tpu_custom_call.1} parent=0
    #allocation2 [shape = 'u8[196608]{0}', space=vmem, size = 0x30000, scoped, tag = 'input window, operand 0, single buffered']
    #allocation3 [shape = 's32[1]{0}', space=sflag, size = 0x4, scoped, tag = 'scoped memory for tpu_custom_call.1']
    #allocation4 [shape = 's32[1]{0}', space=sflag, size = 0x4, scoped, tag = 'scoped memory for tpu_custom_call.1']
    #allocation5 [shape = 'u8[6144]{0}', space=vmem, size = 0x1800, scoped, tag = 'input window, operand 1, single buffered']
    #allocation6 [shape = 's32[1]{0}', space=sflag, size = 0x4, scoped, tag = 'scoped memory for tpu_custom_call.1']
    #allocation7 [shape = 'u8[4096]{0}', space=vmem, size = 0x1000, scoped, tag = 'output window, operand 0, single buffered']
    #allocation8 [shape = 'u8[4096]{0}', space=vmem, size = 0x1000, scoped, tag = 'output window, operand 1, single buffered']
    #allocation9 [shape = 's32[1]{0}', space=sflag, size = 0x4, scoped, tag = 'scoped memory for tpu_custom_call.1']
    %9 = vsyncpa [#allocation3], 0
    %10 = vsyncpa [#allocation6], 0
    %11 = vsyncpa [#allocation4], 0
    %12 = vsyncpa [#allocation9], 0
    // Predicated region
    $region2: #{tpu_custom_call.1} parent=1 // pred_check
      _
    $region3: #{tpu_custom_call.1} parent=1 // pred_check_branch
      %14 = sbr.rel (0) target = $region5
    $region4: #{tpu_custom_call.1} parent=1 // pred_region
      %16 = vsyncadd [#allocation3], 0
      %s17 = sshll.u32 %s0, 4
      %s18 = int_to_ptr.hbm [resolvable:$true] %s17
      %s19 = sshll.u32 [#allocation2], 4
      %s20 = int_to_ptr.vmem [resolvable:$true] %s19
      %25 = dma.hbm_to_vmem [thread:$0]  %s18, 6144, %s20, [#allocation3], 128, 128, 8
    $region5: #{tpu_custom_call.1} parent=1 // pred_fallthru
      _
    // Predicated region
    $region6: #{tpu_custom_call.1} parent=1 // pred_check
      _
    $region7: #{tpu_custom_call.1} parent=1 // pred_check_branch
      %27 = sbr.rel (0) target = $region9
    $region8: #{tpu_custom_call.1} parent=1 // pred_region
      %29 = vsyncadd [#allocation6], 0
      %s30 = sshll.u32 %s1, 4
      %s31 = int_to_ptr.hbm [resolvable:$true] %s30
      %s32 = sshll.u32 [#allocation5], 4
      %s33 = int_to_ptr.vmem [resolvable:$true] %s32
      %38 = dma.hbm_to_vmem [thread:$0]  %s31, 192, %s33, [#allocation6], 16, 16, 1
    $region9: #{tpu_custom_call.1} parent=1 // pred_fallthru
      _
    // Predicated region
    $region10: #{tpu_custom_call.1} parent=1 // pred_check
      _
    $region11: #{tpu_custom_call.1} parent=1 // pred_check_branch
      %40 = sbr.rel (0) target = $region13
    $region12: #{tpu_custom_call.1} parent=1 // pred_region
      %42 = dma.done [#allocation3], 6144
    $region13: #{tpu_custom_call.1} parent=1 // pred_fallthru
      _
    // Predicated region
    $region14: #{tpu_custom_call.1} parent=1 // pred_check
      _
    $region15: #{tpu_custom_call.1} parent=1 // pred_check_branch
      %44 = sbr.rel (0) target = $region17
    $region16: #{tpu_custom_call.1} parent=1 // pred_region
      %46 = dma.done [#allocation6], 192
    $region17: #{tpu_custom_call.1} parent=1 // pred_fallthru
      _
    %v47 = vld [vmem:[#allocation2] sm:$0xff]
    %v48 = vld [vmem:[#allocation5] sm:$0x1]
    %v50 = vperm.slane %v48, 0
    %v52 = vadd.f32 %v47, %v50
    %v53 = vmax.f32 %v52, 0.0
    %s54 = scalar_lea.vmem [#allocation2], 32
    %v55 = vld [vmem:[%s54] sm:$0xff]
    %v56 = vld [vmem:[%s54 + $0x8] sm:$0xff]
    %v57 = vld [vmem:[%s54 + $0x10] sm:$0xff]
    %v58 = vld [vmem:[%s54 + $0x18] sm:$0xff]
    %s59 = scalar_lea.vmem [#allocation5], 1
    %v60 = vld [vmem:[%s59] sm:$0x1]
    %v62 = vperm.slane %v60, 0
    %vm64 = vcmask 261120
    %v66 = vsel %vm64, %v53, 0
    %68 = vmatpush.msra.mxu0 0.0
    %69 = vmatpush.msra.mxu0 0.0
    %70 = vmatpush.msra.mxu0 0.0
    %71 = vmatpush.msra.mxu0 0.0
    %72 = vmatpush.msra.mxu0 0.0
    %73 = vmatpush.msra.mxu0 0.0
    %74 = vmatpush.msra.mxu0 0.0
    %75 = vmatpush.msra.mxu0 0.0
    %76 = vmatpush.msra.mxu0 0.0
    %77 = vmatpush.msra.mxu0 0.0
    %78 = vmatpush.msra.mxu0 0.0
    %79 = vmatpush.msra.mxu0 0.0
    %80 = vmatpush.msra.mxu0 %v58
    %81 = vmatpush.msra.mxu0 %v57
    %82 = vmatpush.msra.mxu0 %v56
    %83 = vmatpush.msra.mxu0 %v55
    %84 = vmatmul.f32.gmra.mxu0 %v66
    %v85 = vpop.f32.mrf.mxu0
    %v86 = vadd.f32 %v62, %v85
    %87 = vdwg.mxu0
    %v88 = vmax.f32 %v86, 0.0
    %s89 = scalar_lea.vmem [#allocation2], 64
    %v90 = vld [vmem:[%s89] sm:$0xff]
    %v91 = vld [vmem:[%s89 + $0x8] sm:$0xff]
    %v92 = vld [vmem:[%s89 + $0x10] sm:$0xff]
    %v93 = vld [vmem:[%s89 + $0x18] sm:$0xff]
    %s94 = scalar_lea.vmem [#allocation5], 2
    %v95 = vld [vmem:[%s94] sm:$0x1]
    %v97 = vperm.slane %v95, 0
    %v100 = vsel %vm64, %v88, 0
    %102 = vmatpush.msra.mxu0 0.0
    %103 = vmatpush.msra.mxu0 0.0
    %104 = vmatpush.msra.mxu0 0.0
    %105 = vmatpush.msra.mxu0 0.0
    %106 = vmatpush.msra.mxu0 0.0
    %107 = vmatpush.msra.mxu0 0.0
    %108 = vmatpush.msra.mxu0 0.0
    %109 = vmatpush.msra.mxu0 0.0
    %110 = vmatpush.msra.mxu0 0.0
    %111 = vmatpush.msra.mxu0 0.0
    %112 = vmatpush.msra.mxu0 0.0
    %113 = vmatpush.msra.mxu0 0.0
    %114 = vmatpush.msra.mxu0 %v93
    %115 = vmatpush.msra.mxu0 %v92
    %116 = vmatpush.msra.mxu0 %v91
    %117 = vmatpush.msra.mxu0 %v90
    %118 = vmatmul.f32.gmra.mxu0 %v100
    %v119 = vpop.f32.mrf.mxu0
    %v120 = vadd.f32 %v97, %v119
    %121 = vdwg.mxu0
    %v122 = vmax.f32 %v120, 0.0
    %s123 = scalar_lea.vmem [#allocation2], 96
    %v124 = vld [vmem:[%s123] sm:$0xff]
    %v125 = vld [vmem:[%s123 + $0x8] sm:$0xff]
    %v126 = vld [vmem:[%s123 + $0x10] sm:$0xff]
    %v127 = vld [vmem:[%s123 + $0x18] sm:$0xff]
    %s128 = scalar_lea.vmem [#allocation5], 3
    %v129 = vld [vmem:[%s128] sm:$0x1]
    %v131 = vperm.slane %v129, 0
    %v134 = vsel %vm64, %v122, 0
    %136 = vmatpush.msra.mxu0 0.0
    %137 = vmatpush.msra.mxu0 0.0
    %138 = vmatpush.msra.mxu0 0.0
    %139 = vmatpush.msra.mxu0 0.0
    %140 = vmatpush.msra.mxu0 0.0
    %141 = vmatpush.msra.mxu0 0.0
    %142 = vmatpush.msra.mxu0 0.0
    %143 = vmatpush.msra.mxu0 0.0
    %144 = vmatpush.msra.mxu0 0.0
    %145 = vmatpush.msra.mxu0 0.0
    %146 = vmatpush.msra.mxu0 0.0
    %147 = vmatpush.msra.mxu0 0.0
    %148 = vmatpush.msra.mxu0 %v127
    %149 = vmatpush.msra.mxu0 %v126
    %150 = vmatpush.msra.mxu0 %v125
    %151 = vmatpush.msra.mxu0 %v124
    %152 = vmatmul.f32.gmra.mxu0 %v134
    %v153 = vpop.f32.mrf.mxu0
    %v154 = vadd.f32 %v131, %v153
    %155 = vdwg.mxu0
    %v156 = vmax.f32 %v154, 0.0
    %s157 = scalar_lea.vmem [#allocation2], 128
    %v158 = vld [vmem:[%s157] sm:$0xff]
    %v159 = vld [vmem:[%s157 + $0x8] sm:$0xff]
    %v160 = vld [vmem:[%s157 + $0x10] sm:$0xff]
    %v161 = vld [vmem:[%s157 + $0x18] sm:$0xff]
    %s162 = scalar_lea.vmem [#allocation5], 4
    %v163 = vld [vmem:[%s162] sm:$0x1]
    %v165 = vperm.slane %v163, 0
    %v168 = vsel %vm64, %v156, 0
    %170 = vmatpush.msra.mxu0 0.0
    %171 = vmatpush.msra.mxu0 0.0
    %172 = vmatpush.msra.mxu0 0.0
    %173 = vmatpush.msra.mxu0 0.0
    %174 = vmatpush.msra.mxu0 0.0
    %175 = vmatpush.msra.mxu0 0.0
    %176 = vmatpush.msra.mxu0 0.0
    %177 = vmatpush.msra.mxu0 0.0
    %178 = vmatpush.msra.mxu0 0.0
    %179 = vmatpush.msra.mxu0 0.0
    %180 = vmatpush.msra.mxu0 0.0
    %181 = vmatpush.msra.mxu0 0.0
    %182 = vmatpush.msra.mxu0 %v161
    %183 = vmatpush.msra.mxu0 %v160
    %184 = vmatpush.msra.mxu0 %v159
    %185 = vmatpush.msra.mxu0 %v158
    %186 = vmatmul.f32.gmra.mxu0 %v168
    %v187 = vpop.f32.mrf.mxu0
    %v188 = vadd.f32 %v165, %v187
    %189 = vdwg.mxu0
    %v190 = vmax.f32 %v188, 0.0
    %s191 = scalar_lea.vmem [#allocation2], 160
    %v192 = vld [vmem:[%s191] sm:$0xff]
    %v193 = vld [vmem:[%s191 + $0x8] sm:$0xff]
    %v194 = vld [vmem:[%s191 + $0x10] sm:$0xff]
    %v195 = vld [vmem:[%s191 + $0x18] sm:$0xff]
    %s196 = scalar_lea.vmem [#allocation5], 5
    %v197 = vld [vmem:[%s196] sm:$0x1]
    %v199 = vperm.slane %v197, 0
    %v202 = vsel %vm64, %v190, 0
    %204 = vmatpush.msra.mxu0 0.0
    %205 = vmatpush.msra.mxu0 0.0
    %206 = vmatpush.msra.mxu0 0.0
    %207 = vmatpush.msra.mxu0 0.0
    %208 = vmatpush.msra.mxu0 0.0
    %209 = vmatpush.msra.mxu0 0.0
    %210 = vmatpush.msra.mxu0 0.0
    %211 = vmatpush.msra.mxu0 0.0
    %212 = vmatpush.msra.mxu0 0.0
    %213 = vmatpush.msra.mxu0 0.0
    %214 = vmatpush.msra.mxu0 0.0
    %215 = vmatpush.msra.mxu0 0.0
    %216 = vmatpush.msra.mxu0 %v195
    %217 = vmatpush.msra.mxu0 %v194
    %218 = vmatpush.msra.mxu0 %v193
    %219 = vmatpush.msra.mxu0 %v192
    %220 = vmatmul.f32.gmra.mxu0 %v202
    %v221 = vpop.f32.mrf.mxu0
    %v222 = vadd.f32 %v199, %v221
    %223 = vdwg.mxu0
    %224 = vst [vmem:[#allocation7] sm:$0xff] %v222
    %s225 = scalar_lea.vmem [#allocation2], 192
    %v226 = vld [vmem:[%s225] sm:$0xff]
    %s227 = scalar_lea.vmem [#allocation5], 6
    %v228 = vld [vmem:[%s227] sm:$0x1]
    %v230 = vperm.slane %v228, 0
    %v232 = vadd.f32 %v226, %v230
    %v233 = vmax.f32 %v232, 0.0
    %s234 = scalar_lea.vmem [#allocation2], 224
    %v235 = vld [vmem:[%s234] sm:$0xff]
    %v236 = vld [vmem:[%s234 + $0x8] sm:$0xff]
    %v237 = vld [vmem:[%s234 + $0x10] sm:$0xff]
    %v238 = vld [vmem:[%s234 + $0x18] sm:$0xff]
    %s239 = scalar_lea.vmem [#allocation5], 7
    %v240 = vld [vmem:[%s239] sm:$0x1]
    %v242 = vperm.slane %v240, 0
    %v245 = vsel %vm64, %v233, 0
    %247 = vmatpush.msra.mxu0 0.0
    %248 = vmatpush.msra.mxu0 0.0
    %249 = vmatpush.msra.mxu0 0.0
    %250 = vmatpush.msra.mxu0 0.0
    %251 = vmatpush.msra.mxu0 0.0
    %252 = vmatpush.msra.mxu0 0.0
    %253 = vmatpush.msra.mxu0 0.0
    %254 = vmatpush.msra.mxu0 0.0
    %255 = vmatpush.msra.mxu0 0.0
    %256 = vmatpush.msra.mxu0 0.0
    %257 = vmatpush.msra.mxu0 0.0
    %258 = vmatpush.msra.mxu0 0.0
    %259 = vmatpush.msra.mxu0 %v238
    %260 = vmatpush.msra.mxu0 %v237
    %261 = vmatpush.msra.mxu0 %v236
    %262 = vmatpush.msra.mxu0 %v235
    %263 = vmatmul.f32.gmra.mxu0 %v245
    %v264 = vpop.f32.mrf.mxu0
    %v265 = vadd.f32 %v242, %v264
    %266 = vdwg.mxu0
    %v267 = vmax.f32 %v265, 0.0
    %s268 = scalar_lea.vmem [#allocation2], 256
    %v269 = vld [vmem:[%s268] sm:$0xff]
    %v270 = vld [vmem:[%s268 + $0x8] sm:$0xff]
    %v271 = vld [vmem:[%s268 + $0x10] sm:$0xff]
    %v272 = vld [vmem:[%s268 + $0x18] sm:$0xff]
    %s273 = scalar_lea.vmem [#allocation5], 8
    %v274 = vld [vmem:[%s273] sm:$0x1]
    %v276 = vperm.slane %v274, 0
    %v279 = vsel %vm64, %v267, 0
    %281 = vmatpush.msra.mxu0 0.0
    %282 = vmatpush.msra.mxu0 0.0
    %283 = vmatpush.msra.mxu0 0.0
    %284 = vmatpush.msra.mxu0 0.0
    %285 = vmatpush.msra.mxu0 0.0
    %286 = vmatpush.msra.mxu0 0.0
    %287 = vmatpush.msra.mxu0 0.0
    %288 = vmatpush.msra.mxu0 0.0
    %289 = vmatpush.msra.mxu0 0.0
    %290 = vmatpush.msra.mxu0 0.0
    %291 = vmatpush.msra.mxu0 0.0
    %292 = vmatpush.msra.mxu0 0.0
    %293 = vmatpush.msra.mxu0 %v272
    %294 = vmatpush.msra.mxu0 %v271
    %295 = vmatpush.msra.mxu0 %v270
    %296 = vmatpush.msra.mxu0 %v269
    %297 = vmatmul.f32.gmra.mxu0 %v279
    %v298 = vpop.f32.mrf.mxu0
    %v299 = vadd.f32 %v276, %v298
    %300 = vdwg.mxu0
    %v301 = vmax.f32 %v299, 0.0
    %s302 = scalar_lea.vmem [#allocation2], 288
    %v303 = vld [vmem:[%s302] sm:$0xff]
    %v304 = vld [vmem:[%s302 + $0x8] sm:$0xff]
    %v305 = vld [vmem:[%s302 + $0x10] sm:$0xff]
    %v306 = vld [vmem:[%s302 + $0x18] sm:$0xff]
    %s307 = scalar_lea.vmem [#allocation5], 9
    %v308 = vld [vmem:[%s307] sm:$0x1]
    %v310 = vperm.slane %v308, 0
    %v313 = vsel %vm64, %v301, 0
    %315 = vmatpush.msra.mxu0 0.0
    %316 = vmatpush.msra.mxu0 0.0
    %317 = vmatpush.msra.mxu0 0.0
    %318 = vmatpush.msra.mxu0 0.0
    %319 = vmatpush.msra.mxu0 0.0
    %320 = vmatpush.msra.mxu0 0.0
    %321 = vmatpush.msra.mxu0 0.0
    %322 = vmatpush.msra.mxu0 0.0
    %323 = vmatpush.msra.mxu0 0.0
    %324 = vmatpush.msra.mxu0 0.0
    %325 = vmatpush.msra.mxu0 0.0
    %326 = vmatpush.msra.mxu0 0.0
    %327 = vmatpush.msra.mxu0 %v306
    %328 = vmatpush.msra.mxu0 %v305
    %329 = vmatpush.msra.mxu0 %v304
    %330 = vmatpush.msra.mxu0 %v303
    %331 = vmatmul.f32.gmra.mxu0 %v313
    %v332 = vpop.f32.mrf.mxu0
    %v333 = vadd.f32 %v310, %v332
    %334 = vdwg.mxu0
    %v335 = vmax.f32 %v333, 0.0
    %s336 = scalar_lea.vmem [#allocation2], 320
    %v337 = vld [vmem:[%s336] sm:$0xff]
    %v338 = vld [vmem:[%s336 + $0x8] sm:$0xff]
    %v339 = vld [vmem:[%s336 + $0x10] sm:$0xff]
    %v340 = vld [vmem:[%s336 + $0x18] sm:$0xff]
    %s341 = scalar_lea.vmem [#allocation5], 10
    %v342 = vld [vmem:[%s341] sm:$0x1]
    %v344 = vperm.slane %v342, 0
    %v347 = vsel %vm64, %v335, 0
    %349 = vmatpush.msra.mxu0 0.0
    %350 = vmatpush.msra.mxu0 0.0
    %351 = vmatpush.msra.mxu0 0.0
    %352 = vmatpush.msra.mxu0 0.0
    %353 = vmatpush.msra.mxu0 0.0
    %354 = vmatpush.msra.mxu0 0.0
    %355 = vmatpush.msra.mxu0 0.0
    %356 = vmatpush.msra.mxu0 0.0
    %357 = vmatpush.msra.mxu0 0.0
    %358 = vmatpush.msra.mxu0 0.0
    %359 = vmatpush.msra.mxu0 0.0
    %360 = vmatpush.msra.mxu0 0.0
    %361 = vmatpush.msra.mxu0 %v340
    %362 = vmatpush.msra.mxu0 %v339
    %363 = vmatpush.msra.mxu0 %v338
    %364 = vmatpush.msra.mxu0 %v337
    %365 = vmatmul.f32.gmra.mxu0 %v347
    %v366 = vpop.f32.mrf.mxu0
    %v367 = vadd.f32 %v344, %v366
    %368 = vdwg.mxu0
    %v369 = vmax.f32 %v367, 0.0
    %s370 = scalar_lea.vmem [#allocation2], 352
    %v371 = vld [vmem:[%s370] sm:$0xff]
    %v372 = vld [vmem:[%s370 + $0x8] sm:$0xff]
    %v373 = vld [vmem:[%s370 + $0x10] sm:$0xff]
    %v374 = vld [vmem:[%s370 + $0x18] sm:$0xff]
    %s375 = scalar_lea.vmem [#allocation5], 11
    %v376 = vld [vmem:[%s375] sm:$0x1]
    %v378 = vperm.slane %v376, 0
    %v381 = vsel %vm64, %v369, 0
    %383 = vmatpush.msra.mxu0 0.0
    %384 = vmatpush.msra.mxu0 0.0
    %385 = vmatpush.msra.mxu0 0.0
    %386 = vmatpush.msra.mxu0 0.0
    %387 = vmatpush.msra.mxu0 0.0
    %388 = vmatpush.msra.mxu0 0.0
    %389 = vmatpush.msra.mxu0 0.0
    %390 = vmatpush.msra.mxu0 0.0
    %391 = vmatpush.msra.mxu0 0.0
    %392 = vmatpush.msra.mxu0 0.0
    %393 = vmatpush.msra.mxu0 0.0
    %394 = vmatpush.msra.mxu0 0.0
    %395 = vmatpush.msra.mxu0 %v374
    %396 = vmatpush.msra.mxu0 %v373
    %397 = vmatpush.msra.mxu0 %v372
    %398 = vmatpush.msra.mxu0 %v371
    %399 = vmatmul.f32.gmra.mxu0 %v381
    %v400 = vpop.f32.mrf.mxu0
    %v401 = vadd.f32 %v378, %v400
    %402 = vdwg.mxu0
    %vm403 = vcmp.gt.f32.partialorder %v401, 20.0
    %v404 = vmin.f32 %v401, 20.0
    %v405 = vmul.f32 %v404, 1.442695
    %v406 = vpow.pop %v405
    %v407 = vadd.f32 %v406, 1.0
    %v408 = vlog2.pop %v407
    %v409 = vmul.f32 %v408, 0.6931472
    %v410 = vmul.f32 -0.5, %v406
    %v411 = vadd.f32 %v410, 1.0
    %v412 = vmul.f32 %v411, %v406
    %v413 = vand.u32 2147483647, %v406
    %vm414 = vcmp.lt.f32.partialorder %v413, 0.0004427343
    %v415 = vsel %vm414, %v412, %v409
    %v416 = vsel %vm403, %v401, %v415
    %417 = vst [vmem:[#allocation8] sm:$0xff] %v416
    // Predicated region
    $region18: #{tpu_custom_call.1} parent=1 // pred_check
      _
    $region19: #{tpu_custom_call.1} parent=1 // pred_check_branch
      %419 = sbr.rel (0) target = $region21
    $region20: #{tpu_custom_call.1} parent=1 // pred_region
      %421 = vsyncadd [#allocation4], 0
      %s423 = sshll.u32 [#allocation7], 4
      %s424 = int_to_ptr.vmem [resolvable:$true] %s423
      %s425 = sshll.u32 %s2, 4
      %s426 = int_to_ptr.hbm [resolvable:$true] %s425
      %428 = dma.vmem_to_hbm [thread:$0]  %s424, 128, %s426, [#allocation4]
    $region21: #{tpu_custom_call.1} parent=1 // pred_fallthru
      _
    // Predicated region
    $region22: #{tpu_custom_call.1} parent=1 // pred_check
      _
    $region23: #{tpu_custom_call.1} parent=1 // pred_check_branch
      %430 = sbr.rel (0) target = $region25
    $region24: #{tpu_custom_call.1} parent=1 // pred_region
      %432 = vsyncadd [#allocation9], 0
      %s434 = sshll.u32 [#allocation8], 4
      %s435 = int_to_ptr.vmem [resolvable:$true] %s434
      %s436 = sshll.u32 %s3, 4
      %s437 = int_to_ptr.hbm [resolvable:$true] %s436
      %439 = dma.vmem_to_hbm [thread:$0]  %s435, 128, %s437, [#allocation9]
    $region25: #{tpu_custom_call.1} parent=1 // pred_fallthru
      _
    // Predicated region
    $region26: #{tpu_custom_call.1} parent=1 // pred_check
      _
    $region27: #{tpu_custom_call.1} parent=1 // pred_check_branch
      %441 = sbr.rel (0) target = $region29
    $region28: #{tpu_custom_call.1} parent=1 // pred_region
      %443 = dma.done [#allocation4], 128
    $region29: #{tpu_custom_call.1} parent=1 // pred_fallthru
      _
    // Predicated region
    $region30: #{tpu_custom_call.1} parent=1 // pred_check
      _
    $region31: #{tpu_custom_call.1} parent=1 // pred_check_branch
      %445 = sbr.rel (0) target = $region33
    $region32: #{tpu_custom_call.1} parent=1 // pred_region
      %447 = dma.done [#allocation9], 128
    $region33: #{tpu_custom_call.1} parent=1 // pred_fallthru
      _
    %448 = vsyncpa [#allocation3], 1
    %449 = vsyncpa [#allocation6], 1
    %450 = vsyncpa [#allocation4], 1
    %451 = vsyncpa [#allocation9], 1

</llo_original>
